<compile_context>
chip_gen: v5e
topology: v5e:2x2
jax: 0.10.0
libtpu: 0.0.40
codegen_flags: <defaults>
</compile_context>

<pallas_src>
import jax
import jax.numpy as jnp
from jax import lax
from jax.experimental import pallas as pl
from jax.experimental.pallas import tpu as pltpu

_MiB = 1024 * 1024


def _round_up(a, b):
    return -(-a // b) * b


def _vmem_capacity_bytes():
    """Physical VMEM of the current chip; conservative fallback if unknown."""
    try:
        return int(pltpu.get_tpu_info().vmem_capacity_bytes)
    except Exception:
        return 64 * _MiB  # assume the smallest (v7x-sized) VMEM


# --------------------------------------------------------------------------
# Kernels
# --------------------------------------------------------------------------
def _mlp_kernel_direct(x_ref, w1t_ref, w2t_ref, h_ref, o_ref):
    """f32 output: accumulate o straight into the resident o output block."""
    j = pl.program_id(1)

    @pl.when(j == 0)
    def _():
        o_ref[...] = jnp.zeros_like(o_ref)

    # First matmul on the MXU, f32 accumulation.
    h = jnp.dot(x_ref[...], w1t_ref[...], preferred_element_type=jnp.float32)
    h_ref[...] = h.astype(h_ref.dtype)
    # Second matmul consumes the in-register h (no VMEM reload, no
    # store->load dependency between the two MXU ops).
    o_ref[...] += jnp.dot(h.astype(w2t_ref.dtype), w2t_ref[...],
                          preferred_element_type=jnp.float32)


def _mlp_kernel_acc(x_ref, w1t_ref, w2t_ref, h_ref, o_ref, acc_ref):
    """Sub-f32 output: accumulate o in an f32 scratch, cast at the last j."""
    j = pl.program_id(1)

    @pl.when(j == 0)
    def _():
        acc_ref[...] = jnp.zeros_like(acc_ref)

    h = jnp.dot(x_ref[...], w1t_ref[...], preferred_element_type=jnp.float32)
    h_ref[...] = h.astype(h_ref.dtype)
    acc_ref[...] += jnp.dot(h.astype(w2t_ref.dtype), w2t_ref[...],
                            preferred_element_type=jnp.float32)

    @pl.when(j == pl.num_programs(1) - 1)
    def _():
        o_ref[...] = acc_ref[...].astype(o_ref.dtype)


# --------------------------------------------------------------------------
# Wrappers
# --------------------------------------------------------------------------
def prepare_zero_bubble_weights(w1, w2, compute_dtype=None):
    """One-time weight prep: cast + transpose out of the forward hot path.

    w1: [4*dim, dim] (PyTorch layout) -> w1t: [dim, 4*dim]
    w2: [dim, 4*dim]                  -> w2t: [4*dim, dim]
    For the best hot path, store these pre-transposed (ideally with dims
    already multiples of 128 so no per-call padding is needed).
    """
    dt = w1.dtype if compute_dtype is None else compute_dtype
    return w1.astype(dt).T, w2.astype(dt).T


def zero_bubble_mlp_forward_t(x, w1t, w2t, *, tb=None, tn=None,
                              compute_dtype=None, out_dtype=None,
                              weight_buffers=None):
    """Forward with pre-transposed weights. Returns (h, o)."""
    B, dim = x.shape
    dim_w, hidden = w1t.shape
    assert dim_w == dim, (w1t.shape, x.shape)
    assert w2t.shape == (hidden, dim), (w2t.shape, hidden, dim)

    if out_dtype is None:
        out_dtype = x.dtype
    if compute_dtype is None:
        compute_dtype = w1t.dtype
    isz = jnp.dtype(compute_dtype).itemsize
    out_isz = jnp.dtype(out_dtype).itemsize
    direct_acc = jnp.dtype(out_dtype) == jnp.dtype(jnp.float32)

    # ---- generation-aware VMEM budget ------------------------------------
    phys = _vmem_capacity_bytes()
    if phys >= 100 * _MiB:        # v5e / v6e: 128 MiB physical VMEM
        budget = 96 * _MiB
        vmem_cap = 112 * _MiB
        tb_cap, tn_cap = 512, 1024
    else:                         # v7x: 64 MiB physical -> leave headroom
        budget = 40 * _MiB
        vmem_cap = 52 * _MiB
        tb_cap, tn_cap = 256, 512

    # Sublane alignment: packed dtypes need taller tiles (bf16:16, 8-bit:32).
    align = 8 * max(1, 4 // isz)
    dim_p = _round_up(dim, 128)                  # lane-dense K1 / output N2

    if tb is None:
        tb = min(tb_cap, _round_up(B, align))
    tb = max(align, _round_up(tb, align))
    if tn is None:
        tn = min(tn_cap, _round_up(hidden, 128))
    tn = max(128, _round_up(tn, 128))

    def vmem_estimate(tb_, tn_):
        est = (2 * tb_ * dim_p * isz             # x tile (double buffered)
               + 2 * dim_p * tn_ * isz           # w1t chunk
               + 2 * tn_ * dim_p * isz           # w2t chunk
               + 2 * tb_ * tn_ * out_isz         # h output block
               + 2 * tb_ * dim_p * out_isz)      # o output block
        if not direct_acc:
            est += tb_ * dim_p * 4               # f32 o accumulator scratch
        return est

    # Shrink tn first (fewer weight bytes per step), then tb, until we fit.
    while vmem_estimate(tb, tn) > budget and (tn > 128 or tb > align):
        if tn > 128:
            tn = max(128, _round_up(tn // 2, 128))
        else:
            tb = max(align, _round_up(tb // 2, align))

    Bp = _round_up(B, tb)
    Hp = _round_up(hidden, tn)
    grid = (Bp // tb, Hp // tn)

    # ---- operand prep: cast + zero-pad (transpose was done once, outside) -
    x_c = x.astype(compute_dtype)
    w1t_c = w1t.astype(compute_dtype)
    w2t_c = w2t.astype(compute_dtype)

    if (Bp, dim_p) != (B, dim):
        x_c = jnp.zeros((Bp, dim_p), compute_dtype).at[:B, :dim].set(x_c)
    if (dim_p, Hp) != (dim, hidden):
        w1t_c = jnp.zeros((dim_p, Hp), compute_dtype).at[:dim, :hidden].set(w1t_c)
        w2t_c = jnp.zeros((Hp, dim_p), compute_dtype).at[:hidden, :dim].set(w2t_c)

    est = vmem_estimate(tb, tn)
    vmem_limit = int(min(vmem_cap, max(32 * _MiB, est + est // 2)))

    # Cost hint: weight chunks are re-read once per batch tile.
    n_btiles = Bp // tb
    flops = 4 * Bp * dim_p * Hp                  # two matmuls, 2*M*K*N each
    bytes_accessed = (isz * Bp * dim_p                               # x
                      + isz * n_btiles * (dim_p * Hp + Hp * dim_p)   # weights
                      + out_isz * (Bp * Hp + Bp * dim_p))            # h, o
    cost = pl.CostEstimate(flops=int(flops), transcendentals=0,
                           bytes_accessed=int(bytes_accessed))

    w_spec_kwargs = {}
    if weight_buffers is not None and int(weight_buffers) != 2:
        w_spec_kwargs = dict(pipeline_mode=pl.Buffered(int(weight_buffers)))

    in_specs = [
        pl.BlockSpec((tb, dim_p), lambda i, j: (i, 0)),                     # x
        pl.BlockSpec((dim_p, tn), lambda i, j: (0, j), **w_spec_kwargs),    # w1t
        pl.BlockSpec((tn, dim_p), lambda i, j: (j, 0), **w_spec_kwargs),    # w2t
    ]
    out_specs = [
        pl.BlockSpec((tb, tn), lambda i, j: (i, j)),      # h block
        pl.BlockSpec((tb, dim_p), lambda i, j: (i, 0)),   # o block (resident over j)
    ]

    if direct_acc:
        kernel = _mlp_kernel_direct
        scratch_shapes = []
    else:
        kernel = _mlp_kernel_acc
        scratch_shapes = [pltpu.VMEM((tb, dim_p), jnp.float32)]

    out_shapes = (
        jax.ShapeDtypeStruct((Bp, Hp), out_dtype),      # h (padded)
        jax.ShapeDtypeStruct((Bp, dim_p), out_dtype),   # o (padded)
    )

    h_p, o_p = pl.pallas_call(
        kernel,
        out_shape=out_shapes,
        grid_spec=pltpu.PrefetchScalarGridSpec(
            num_scalar_prefetch=0,
            grid=grid,
            in_specs=in_specs,
            out_specs=out_specs,
            scratch_shapes=scratch_shapes,
        ),
        compiler_params=pltpu.CompilerParams(
            dimension_semantics=("parallel", "arbitrary"),
            vmem_limit_bytes=vmem_limit,
        ),
        cost_estimate=cost,
    )(x_c, w1t_c, w2t_c)

    h = h_p[:B, :hidden]
    o = o_p[:B, :dim]
    return h, o


def zero_bubble_mlp_forward(x, w1, w2, **kwargs):
    """Convenience wrapper taking PyTorch-layout weights.

    w1: [4*dim, dim], w2: [dim, 4*dim]. Returns (h, o) like the module.
    For the hot path, pre-transpose once with prepare_zero_bubble_weights.
    """
    compute_dtype = kwargs.get("compute_dtype", None)
    w1t, w2t = prepare_zero_bubble_weights(w1, w2, compute_dtype)
    return zero_bubble_mlp_forward_t(x, w1t, w2t, **kwargs)


# --------------------------------------------------------------------------
# Tests
# --------------------------------------------------------------------------
if __name__ == "__main__":
    key = jax.random.PRNGKey(0)
    k_a, k_b = jax.random.split(key)

    def reference(x, w1, w2):
        h = jnp.dot(x, w1.T, precision=lax.Precision.HIGHEST)
        o = jnp.dot(h, w2.T, precision=lax.Precision.HIGHEST)
        return h, o

    # --- primary test: dim=32 -> hidden=128, batch=8 -----------------------
    B, dim = 8, 32
    hidden = 4 * dim
    kx, k1, k2 = jax.random.split(k_a, 3)
    x = jax.random.normal(kx, (B, dim), dtype=jnp.float32)
    # PyTorch Linear [out_features, in_features] layout.
    w1 = jax.random.normal(k1, (hidden, dim), dtype=jnp.float32) * 0.05
    w2 = jax.random.normal(k2, (dim, hidden), dtype=jnp.float32) * 0.05

    h, o = zero_bubble_mlp_forward(x, w1, w2)
    jax.block_until_ready((h, o))
    h_ref, o_ref = reference(x, w1, w2)
    assert h.shape == (B, hidden) and o.shape == (B, dim)
    assert jnp.allclose(h, h_ref, atol=1e-4, rtol=1e-4)
    assert jnp.allclose(o, o_ref, atol=1e-4, rtol=1e-4)

    # --- ragged test: exercises padding + pre-transposed hot path ----------
    B2, dim2 = 20, 48
    hidden2 = 4 * dim2
    kx2, k12, k22 = jax.random.split(k_b, 3)
    x2 = jax.random.normal(kx2, (B2, dim2), dtype=jnp.float32)
    w12 = jax.random.normal(k12, (hidden2, dim2), dtype=jnp.float32) * 0.05
    w22 = jax.random.normal(k22, (dim2, hidden2), dtype=jnp.float32) * 0.05

    w12t, w22t = prepare_zero_bubble_weights(w12, w22)   # one-time prep
    h2, o2 = zero_bubble_mlp_forward_t(x2, w12t, w22t)
    jax.block_until_ready((h2, o2))
    h2_ref, o2_ref = reference(x2, w12, w22)
    assert h2.shape == (B2, hidden2) and o2.shape == (B2, dim2)
    assert jnp.allclose(h2, h2_ref, atol=1e-4, rtol=1e-4)
    assert jnp.allclose(o2, o2_ref, atol=1e-4, rtol=1e-4)

    # --- bf16 fast-path smoke test (f32 in/out, bf16 MXU feed) -------------
    h3, o3 = zero_bubble_mlp_forward(x, w1, w2, compute_dtype=jnp.bfloat16)
    jax.block_until_ready((h3, o3))
    assert h3.shape == (B, hidden) and o3.shape == (B, dim)
    assert jnp.allclose(h3, h_ref, atol=3e-2, rtol=3e-2)
    assert jnp.allclose(o3, o_ref, atol=3e-2, rtol=3e-2)

    print("KERNEL_OK")
</pallas_src>

<mosaic_0001>
module attributes {stable_mosaic.version = 11 : i64} {
  func.func @_mlp_kernel_direct(%arg0: i32, %arg1: i32, %arg2: memref<8x128xf32, #tpu.memory_space<vmem>>, %arg3: memref<128x128xf32, #tpu.memory_space<vmem>>, %arg4: memref<128x128xf32, #tpu.memory_space<vmem>>, %arg5: memref<8x128xf32, #tpu.memory_space<vmem>>, %arg6: memref<8x128xf32, #tpu.memory_space<vmem>>) attributes {dimension_semantics = [#tpu.dimension_semantics<parallel>, #tpu.dimension_semantics<arbitrary>], iteration_bounds = array<i64: 1, 1>, scalar_prefetch = 0 : i64, scratch_operands = 0 : i64, tpu.core_type = #tpu.core_type<tc>, window_params = [{transform_indices = @transform_0, window_bounds = array<i64: 8, 128>}, {transform_indices = @transform_1, window_bounds = array<i64: 128, 128>}, {transform_indices = @transform_2, window_bounds = array<i64: 128, 128>}, {transform_indices = @transform_3, window_bounds = array<i64: 8, 128>}, {transform_indices = @transform_4, window_bounds = array<i64: 8, 128>}]} {
    %c0_i32 = arith.constant 0 : i32
    %0 = arith.cmpi eq, %arg1, %c0_i32 : i32
    %1 = arith.extui %0 : i1 to i32
    %c0_i32_0 = arith.constant 0 : i32
    %2 = arith.cmpi ne, %1, %c0_i32_0 : i32
    scf.if %2 {
      %cst_13 = arith.constant 0.000000e+00 : f32
      %12 = vector.broadcast %cst_13 : f32 to vector<8x128xf32>
      %c0_14 = arith.constant 0 : index
      %c0_15 = arith.constant 0 : index
      %13 = vector.load %arg6[%c0_14, %c0_15] : memref<8x128xf32, #tpu.memory_space<vmem>>, vector<8x128xf32>
      tpu.vector_store %arg6[%c0_14, %c0_15], %12 {strides = array<i32>} : memref<8x128xf32, #tpu.memory_space<vmem>>, vector<8x128xf32>,
    } else {
    }
    %c0 = arith.constant 0 : index
    %c0_1 = arith.constant 0 : index
    %3 = vector.load %arg2[%c0, %c0_1] : memref<8x128xf32, #tpu.memory_space<vmem>>, vector<8x128xf32>
    %c0_2 = arith.constant 0 : index
    %c0_3 = arith.constant 0 : index
    %4 = vector.load %arg3[%c0_2, %c0_3] : memref<128x128xf32, #tpu.memory_space<vmem>>, vector<128x128xf32>
    %cst = arith.constant dense<0.000000e+00> : vector<8x128xf32>
    %5 = tpu.matmul %3, %4, %cst {dimension_numbers = #tpu.dot_dimension_numbers<[1], [0], [0], [1], [0, 0, 1, 1], [], []>} : vector<8x128xf32>, vector<128x128xf32>, vector<8x128xf32> -> vector<8x128xf32>
    %c0_4 = arith.constant 0 : index
    %c0_5 = arith.constant 0 : index
    %6 = vector.load %arg5[%c0_4, %c0_5] : memref<8x128xf32, #tpu.memory_space<vmem>>, vector<8x128xf32>
    tpu.vector_store %arg5[%c0_4, %c0_5], %5 {strides = array<i32>} : memref<8x128xf32, #tpu.memory_space<vmem>>, vector<8x128xf32>,
    %c0_6 = arith.constant 0 : index
    %c0_7 = arith.constant 0 : index
    %7 = vector.load %arg6[%c0_6, %c0_7] : memref<8x128xf32, #tpu.memory_space<vmem>>, vector<8x128xf32>
    %c0_8 = arith.constant 0 : index
    %c0_9 = arith.constant 0 : index
    %8 = vector.load %arg4[%c0_8, %c0_9] : memref<128x128xf32, #tpu.memory_space<vmem>>, vector<128x128xf32>
    %cst_10 = arith.constant dense<0.000000e+00> : vector<8x128xf32>
    %9 = tpu.matmul %5, %8, %cst_10 {dimension_numbers = #tpu.dot_dimension_numbers<[1], [0], [0], [1], [0, 0, 1, 1], [], []>} : vector<8x128xf32>, vector<128x128xf32>, vector<8x128xf32> -> vector<8x128xf32>
    %10 = arith.addf %7, %9 : vector<8x128xf32>
    %c0_11 = arith.constant 0 : index
    %c0_12 = arith.constant 0 : index
    %11 = vector.load %arg6[%c0_11, %c0_12] : memref<8x128xf32, #tpu.memory_space<vmem>>, vector<8x128xf32>
    tpu.vector_store %arg6[%c0_11, %c0_12], %10 {strides = array<i32>} : memref<8x128xf32, #tpu.memory_space<vmem>>, vector<8x128xf32>,
    return
  }
  func.func @transform_0(%arg0: i32, %arg1: i32) -> (i32, i32) {
    %c0_i32 = arith.constant 0 : i32
    %c0_i32_0 = arith.constant 0 : i32
    return %arg0, %c0_i32 : i32, i32
  }
  func.func @transform_1(%arg0: i32, %arg1: i32) -> (i32, i32) {
    %c0_i32 = arith.constant 0 : i32
    %c0_i32_0 = arith.constant 0 : i32
    return %c0_i32, %arg1 : i32, i32
  }
  func.func @transform_2(%arg0: i32, %arg1: i32) -> (i32, i32) {
    %c0_i32 = arith.constant 0 : i32
    %c0_i32_0 = arith.constant 0 : i32
    return %arg1, %c0_i32 : i32, i32
  }
  func.func @transform_3(%arg0: i32, %arg1: i32) -> (i32, i32) {
    %c0_i32 = arith.constant 0 : i32
    return %arg0, %arg1 : i32, i32
  }
  func.func @transform_4(%arg0: i32, %arg1: i32) -> (i32, i32) {
    %c0_i32 = arith.constant 0 : i32
    %c0_i32_0 = arith.constant 0 : i32
    return %arg0, %c0_i32 : i32, i32
  }
}

</mosaic_0001>

<llo_original>
// kernel: tpu_custom_call.1
$region0: #{tpu_custom_call.1}
  #allocation0 [shape = 'u32[]', space=smem, size = 0x4, offset = 0x4, fixed_abs, tag = 'smem constant byte address 0x4 - core index']
  #allocation1 [shape = 'u32[72,128]{1,0:T(1,128)}', space=vmem, size = 0x9000, scoped, tag = 'internal scratch']
  %s0 = inlined_call_operand.hbm [shape: f32[8,128], index: 0, kind: input, shape index: {}]
  %s1 = inlined_call_operand.hbm [shape: f32[128,128], index: 1, kind: input, shape index: {}]
  %s2 = inlined_call_operand.hbm [shape: f32[128,128], index: 2, kind: input, shape index: {}]
  %s3 = inlined_call_operand.hbm [shape: f32[8,128], index: 3, kind: output, shape index: {0}]
  %s4 = inlined_call_operand.hbm [shape: f32[8,128], index: 4, kind: output, shape index: {1}]
  %5 = xla_tuple %s3, %s4
  %s6 = sld [smem:[#allocation0]]
  $region46: #{tpu_custom_call.1} parent=0
    _
  %s8 = ssub.s32 1, %s6
  %s9 = scalar_select 0, %s8, %s6
  $region1: #{tpu_custom_call.1} parent=0
    #allocation2 [shape = 'u8[4096]{0}', space=vmem, size = 0x1000, scoped, tag = 'input window, operand 0, single buffered']
    #allocation3 [shape = 's32[1]{0}', space=sflag, size = 0x4, scoped, tag = 'scoped memory for tpu_custom_call.1']
    #allocation4 [shape = 's32[1]{0}', space=sflag, size = 0x4, scoped, tag = 'scoped memory for tpu_custom_call.1']
    #allocation5 [shape = 'u8[65536]{0}', space=vmem, size = 0x10000, scoped, tag = 'input window, operand 1, single buffered']
    #allocation6 [shape = 's32[1]{0}', space=sflag, size = 0x4, scoped, tag = 'scoped memory for tpu_custom_call.1']
    #allocation7 [shape = 'u8[65536]{0}', space=vmem, size = 0x10000, scoped, tag = 'input window, operand 2, single buffered']
    #allocation8 [shape = 'u8[4096]{0}', space=vmem, size = 0x1000, scoped, tag = 'output window, operand 0, single buffered']
    #allocation9 [shape = 'u8[4096]{0}', space=vmem, size = 0x1000, scoped, tag = 'output window, operand 1, single buffered']
    #allocation10 [shape = 's32[1]{0}', space=sflag, size = 0x4, scoped, tag = 'scoped memory for tpu_custom_call.1']
    %10 = vsyncpa [#allocation3], 0
    %11 = vsyncpa [#allocation6], 0
    %12 = vsyncpa [#allocation4], 0
    %13 = vsyncpa [#allocation10], 0
    // Predicated region
    $region2: #{tpu_custom_call.1} parent=1 // pred_check
      _
    $region3: #{tpu_custom_call.1} parent=1 // pred_check_branch
      %15 = sbr.rel (0) target = $region5
    $region4: #{tpu_custom_call.1} parent=1 // pred_region
      %17 = vsyncadd [#allocation3], 0
      %s19 = sshll.u32 %s0, 4
      %s20 = int_to_ptr.hbm [resolvable:$true] %s19
      %s21 = sshll.u32 [#allocation2], 4
      %s22 = int_to_ptr.vmem [resolvable:$true] %s21
      %24 = dma.hbm_to_vmem [thread:$0]  %s20, 128, %s22, [#allocation3]
    $region5: #{tpu_custom_call.1} parent=1 // pred_fallthru
      _
    // Predicated region
    $region6: #{tpu_custom_call.1} parent=1 // pred_check
      _
    $region7: #{tpu_custom_call.1} parent=1 // pred_check_branch
      %26 = sbr.rel (0) target = $region9
    $region8: #{tpu_custom_call.1} parent=1 // pred_region
      %28 = vsyncadd [#allocation6], 0
      %s29 = sshll.u32 %s1, 4
      %s30 = int_to_ptr.hbm [resolvable:$true] %s29
      %s31 = sshll.u32 [#allocation5], 4
      %s32 = int_to_ptr.vmem [resolvable:$true] %s31
      %37 = dma.hbm_to_vmem [thread:$0]  %s30, 2048, %s32, [#allocation6], 128, 128, 8
    $region9: #{tpu_custom_call.1} parent=1 // pred_fallthru
      _
    // Predicated region
    $region10: #{tpu_custom_call.1} parent=1 // pred_check
      _
    $region11: #{tpu_custom_call.1} parent=1 // pred_check_branch
      %39 = sbr.rel (0) target = $region13
    $region12: #{tpu_custom_call.1} parent=1 // pred_region
      %41 = vsyncadd [#allocation6], 0
      %s42 = sshll.u32 %s2, 4
      %s43 = int_to_ptr.hbm [resolvable:$true] %s42
      %s44 = sshll.u32 [#allocation7], 4
      %s45 = int_to_ptr.vmem [resolvable:$true] %s44
      %50 = dma.hbm_to_vmem [thread:$0]  %s43, 2048, %s45, [#allocation6], 128, 128, 8
    $region13: #{tpu_custom_call.1} parent=1 // pred_fallthru
      _
    // Predicated region
    $region14: #{tpu_custom_call.1} parent=1 // pred_check
      _
    $region15: #{tpu_custom_call.1} parent=1 // pred_check_branch
      %52 = sbr.rel (0) target = $region17
    $region16: #{tpu_custom_call.1} parent=1 // pred_region
      %54 = dma.done [#allocation3], 128
    $region17: #{tpu_custom_call.1} parent=1 // pred_fallthru
      _
    // Predicated region
    $region18: #{tpu_custom_call.1} parent=1 // pred_check
      _
    $region19: #{tpu_custom_call.1} parent=1 // pred_check_branch
      %56 = sbr.rel (0) target = $region21
    $region20: #{tpu_custom_call.1} parent=1 // pred_region
      %58 = dma.done [#allocation6], 2048
    $region21: #{tpu_custom_call.1} parent=1 // pred_fallthru
      _
    // Predicated region
    $region22: #{tpu_custom_call.1} parent=1 // pred_check
      _
    $region23: #{tpu_custom_call.1} parent=1 // pred_check_branch
      %60 = sbr.rel (0) target = $region25
    $region24: #{tpu_custom_call.1} parent=1 // pred_region
      %62 = dma.done [#allocation6], 2048
    $region25: #{tpu_custom_call.1} parent=1 // pred_fallthru
      _
    %p63 = scmp.eq.s32.totalorder 0, 0
    // Predicated region
    $region26: #{tpu_custom_call.1} parent=1 // pred_check
      %p64 = pneg %p63
    $region27: #{tpu_custom_call.1} parent=1 // pred_check_branch
      %66 = sbr.rel (%p64) target = $region29
    $region28: #{tpu_custom_call.1} parent=1 // pred_region
      %67 = vst [vmem:[#allocation9] sm:$0xff] 0.0
    $region29: #{tpu_custom_call.1} parent=1 // pred_fallthru
      _
    %v68 = vld [vmem:[#allocation2] sm:$0xff]
    %v69 = vld [vmem:[#allocation5] sm:$0xff]
    %v70 = vld [vmem:[#allocation5 + $0x8] sm:$0xff]
    %v71 = vld [vmem:[#allocation5 + $0x10] sm:$0xff]
    %v72 = vld [vmem:[#allocation5 + $0x18] sm:$0xff]
    %v73 = vld [vmem:[#allocation5 + $0x20] sm:$0xff]
    %v74 = vld [vmem:[#allocation5 + $0x28] sm:$0xff]
    %v75 = vld [vmem:[#allocation5 + $0x30] sm:$0xff]
    %v76 = vld [vmem:[#allocation5 + $0x38] sm:$0xff]
    %v77 = vld [vmem:[#allocation5 + $0x40] sm:$0xff]
    %v78 = vld [vmem:[#allocation5 + $0x48] sm:$0xff]
    %v79 = vld [vmem:[#allocation5 + $0x50] sm:$0xff]
    %v80 = vld [vmem:[#allocation5 + $0x58] sm:$0xff]
    %v81 = vld [vmem:[#allocation5 + $0x60] sm:$0xff]
    %v82 = vld [vmem:[#allocation5 + $0x68] sm:$0xff]
    %v83 = vld [vmem:[#allocation5 + $0x70] sm:$0xff]
    %v84 = vld [vmem:[#allocation5 + $0x78] sm:$0xff]
    %85 = vmatpush.msra.mxu0 %v84
    %86 = vmatpush.msra.mxu0 %v83
    %87 = vmatpush.msra.mxu0 %v82
    %88 = vmatpush.msra.mxu0 %v81
    %89 = vmatpush.msra.mxu0 %v80
    %90 = vmatpush.msra.mxu0 %v79
    %91 = vmatpush.msra.mxu0 %v78
    %92 = vmatpush.msra.mxu0 %v77
    %93 = vmatpush.msra.mxu0 %v76
    %94 = vmatpush.msra.mxu0 %v75
    %95 = vmatpush.msra.mxu0 %v74
    %96 = vmatpush.msra.mxu0 %v73
    %97 = vmatpush.msra.mxu0 %v72
    %98 = vmatpush.msra.mxu0 %v71
    %99 = vmatpush.msra.mxu0 %v70
    %100 = vmatpush.msra.mxu0 %v69
    %101 = vmatmul.f32.gmra.mxu0 %v68
    %v102 = vpop.f32.mrf.mxu0
    %v103 = vadd.f32 0.0, %v102
    %104 = vdwg.mxu0
    %105 = vst [vmem:[#allocation8] sm:$0xff] %v103
    %v106 = vld [vmem:[#allocation9] sm:$0xff]
    %v107 = vld [vmem:[#allocation7] sm:$0xff]
    %v108 = vld [vmem:[#allocation7 + $0x8] sm:$0xff]
    %v109 = vld [vmem:[#allocation7 + $0x10] sm:$0xff]
    %v110 = vld [vmem:[#allocation7 + $0x18] sm:$0xff]
    %v111 = vld [vmem:[#allocation7 + $0x20] sm:$0xff]
    %v112 = vld [vmem:[#allocation7 + $0x28] sm:$0xff]
    %v113 = vld [vmem:[#allocation7 + $0x30] sm:$0xff]
    %v114 = vld [vmem:[#allocation7 + $0x38] sm:$0xff]
    %v115 = vld [vmem:[#allocation7 + $0x40] sm:$0xff]
    %v116 = vld [vmem:[#allocation7 + $0x48] sm:$0xff]
    %v117 = vld [vmem:[#allocation7 + $0x50] sm:$0xff]
    %v118 = vld [vmem:[#allocation7 + $0x58] sm:$0xff]
    %v119 = vld [vmem:[#allocation7 + $0x60] sm:$0xff]
    %v120 = vld [vmem:[#allocation7 + $0x68] sm:$0xff]
    %v121 = vld [vmem:[#allocation7 + $0x70] sm:$0xff]
    %v122 = vld [vmem:[#allocation7 + $0x78] sm:$0xff]
    %123 = vmatpush.msra.mxu0 %v122
    %124 = vmatpush.msra.mxu0 %v121
    %125 = vmatpush.msra.mxu0 %v120
    %126 = vmatpush.msra.mxu0 %v119
    %127 = vmatpush.msra.mxu0 %v118
    %128 = vmatpush.msra.mxu0 %v117
    %129 = vmatpush.msra.mxu0 %v116
    %130 = vmatpush.msra.mxu0 %v115
    %131 = vmatpush.msra.mxu0 %v114
    %132 = vmatpush.msra.mxu0 %v113
    %133 = vmatpush.msra.mxu0 %v112
    %134 = vmatpush.msra.mxu0 %v111
    %135 = vmatpush.msra.mxu0 %v110
    %136 = vmatpush.msra.mxu0 %v109
    %137 = vmatpush.msra.mxu0 %v108
    %138 = vmatpush.msra.mxu0 %v107
    %139 = vmatmul.f32.gmra.mxu0 %v103
    %v140 = vpop.f32.mrf.mxu0
    %v141 = vadd.f32 0.0, %v140
    %142 = vdwg.mxu0
    %v143 = vadd.f32 %v106, %v141
    %144 = vst [vmem:[#allocation9] sm:$0xff] %v143
    // Predicated region
    $region30: #{tpu_custom_call.1} parent=1 // pred_check
      _
    $region31: #{tpu_custom_call.1} parent=1 // pred_check_branch
      %146 = sbr.rel (0) target = $region33
    $region32: #{tpu_custom_call.1} parent=1 // pred_region
      %148 = vsyncadd [#allocation4], 0
      %s150 = sshll.u32 [#allocation8], 4
      %s151 = int_to_ptr.vmem [resolvable:$true] %s150
      %s152 = sshll.u32 %s3, 4
      %s153 = int_to_ptr.hbm [resolvable:$true] %s152
      %155 = dma.vmem_to_hbm [thread:$0]  %s151, 128, %s153, [#allocation4]
    $region33: #{tpu_custom_call.1} parent=1 // pred_fallthru
      _
    // Predicated region
    $region34: #{tpu_custom_call.1} parent=1 // pred_check
      _
    $region35: #{tpu_custom_call.1} parent=1 // pred_check_branch
      %157 = sbr.rel (0) target = $region37
    $region36: #{tpu_custom_call.1} parent=1 // pred_region
      %159 = vsyncadd [#allocation10], 0
      %s161 = sshll.u32 [#allocation9], 4
      %s162 = int_to_ptr.vmem [resolvable:$true] %s161
      %s163 = sshll.u32 %s4, 4
      %s164 = int_to_ptr.hbm [resolvable:$true] %s163
      %166 = dma.vmem_to_hbm [thread:$0]  %s162, 128, %s164, [#allocation10]
    $region37: #{tpu_custom_call.1} parent=1 // pred_fallthru
      _
    // Predicated region
    $region38: #{tpu_custom_call.1} parent=1 // pred_check
      _
    $region39: #{tpu_custom_call.1} parent=1 // pred_check_branch
      %168 = sbr.rel (0) target = $region41
    $region40: #{tpu_custom_call.1} parent=1 // pred_region
      %170 = dma.done [#allocation4], 128
    $region41: #{tpu_custom_call.1} parent=1 // pred_fallthru
      _
    // Predicated region
    $region42: #{tpu_custom_call.1} parent=1 // pred_check
      _
    $region43: #{tpu_custom_call.1} parent=1 // pred_check_branch
      %172 = sbr.rel (0) target = $region45
    $region44: #{tpu_custom_call.1} parent=1 // pred_region
      %174 = dma.done [#allocation10], 128
    $region45: #{tpu_custom_call.1} parent=1 // pred_fallthru
      _
    %175 = vsyncpa [#allocation3], 1
    %176 = vsyncpa [#allocation6], 1
    %177 = vsyncpa [#allocation4], 1
    %178 = vsyncpa [#allocation10], 1

</llo_original>
